<compile_context>
chip_gen: v5e
topology: v5e:2x2
jax: 0.10.0
libtpu: 0.0.40
codegen_flags: <defaults>
</compile_context>

<pallas_src>
import functools

import jax
import jax.numpy as jnp
from jax import lax
from jax.experimental import pallas as pl
from jax.experimental.pallas import tpu as pltpu


def _proj_kernel(x_ref, w_ref, b_ref, g_ref):
    # x_ref: (1, T, D)   w_ref: (D, 3H)   b_ref: (1, 3H)   g_ref: (1, T, 3H)
    g_ref[0] = (
        jnp.dot(x_ref[0], w_ref[...], preferred_element_type=jnp.float32)
        + b_ref[...]
    ).astype(g_ref.dtype)


def _recurrent_kernel(g_ref, w_h_ref, b_hn_ref, fc_w_ref, fc_b_ref,
                      out_ref, h_ref, *, seq_len, chunk):
    # g_ref:    (B, TT, 3H) gate chunk (input projections, biases pre-folded)
    # w_h_ref:  (H, 3H) fused recurrent weights [r|z|n]
    # b_hn_ref: (1, H)   hidden bias of the n gate (must stay inside r*(...))
    # fc_w_ref: (H, O), fc_b_ref: (1, O)
    # out_ref:  (B, O)   h_ref: (B, H) persistent scratch across grid steps
    c = pl.program_id(0)
    n_chunks = pl.num_programs(0)

    @pl.when(c == 0)
    def _():
        h_ref[...] = jnp.zeros_like(h_ref)

    g = g_ref[...]                     # (B, TT, 3H) one load per chunk
    w_h = w_h_ref[...]                 # hoisted out of the step loop
    b_hn = b_hn_ref[...]
    h = h_ref[...]                     # h carried in vregs within the chunk
    H = h.shape[1]

    for i in range(chunk):             # static full unroll (LLO visibility)
        gx = g[:, i, :]                # (B, 3H)
        gh = jnp.dot(h, w_h, preferred_element_type=jnp.float32)   # (B, 3H)
        r = jax.nn.sigmoid(gx[:, :H] + gh[:, :H])
        z = jax.nn.sigmoid(gx[:, H:2 * H] + gh[:, H:2 * H])
        n = jnp.tanh(gx[:, 2 * H:] + r * (gh[:, 2 * H:] + b_hn))
        h_new = (1.0 - z) * n + z * h
        if seq_len % chunk != 0:       # only the ragged-tail case needs masking
            h_new = jnp.where(c * chunk + i < seq_len, h_new, h)
        h = h_new

    h_ref[...] = h                     # persist across chunks

    @pl.when(c == n_chunks - 1)
    def _():
        out_ref[...] = (
            jnp.dot(h, fc_w_ref[...], preferred_element_type=jnp.float32)
            + fc_b_ref[...]
        ).astype(out_ref.dtype)


def rpsr_dqn_forward(x, params):
    """x: (B, T, D) float32 (batch_first, like PyTorch). Returns (B, O)."""
    B, T, D = x.shape
    w_ih = params["weight_ih_l0"]      # (3H, D)
    w_hh = params["weight_hh_l0"]      # (3H, H)
    b_ih = params["bias_ih_l0"]        # (3H,)
    b_hh = params["bias_hh_l0"]        # (3H,)
    fc_w = params["fc_weight"]         # (O, H)
    fc_b = params["fc_bias"]           # (O,)
    H = w_hh.shape[1]
    O = fc_w.shape[0]
    G = 3 * H

    # One-time wrapper glue: transpose for right-multiplication and fuse gates/biases.
    w_i_fused = w_ih.T                 # (D, 3H), columns [r | z | n]
    w_h_fused = w_hh.T                 # (H, 3H)
    b_proj = jnp.concatenate([b_ih[:H] + b_hh[:H],          # b_ir + b_hr
                              b_ih[H:2 * H] + b_hh[H:2 * H],  # b_iz + b_hz
                              b_ih[2 * H:]])[None, :]        # b_in (keep b_hn separate)
    b_hn = b_hh[2 * H:][None, :]       # (1, H)
    fc_wt = fc_w.T                     # (H, O)
    fc_b2 = fc_b[None, :]              # (1, O)

    # ---- Stage 1: input projections, batched, off the recurrent path ----
    gates = pl.pallas_call(
        _proj_kernel,
        out_shape=jax.ShapeDtypeStruct((B, T, G), jnp.float32),
        grid=(B,),
        in_specs=[
            pl.BlockSpec((1, T, D), lambda b: (b, 0, 0)),
            pl.BlockSpec((D, G), lambda b: (0, 0)),
            pl.BlockSpec((1, G), lambda b: (0, 0)),
        ],
        out_specs=pl.BlockSpec((1, T, G), lambda b: (b, 0, 0)),
        compiler_params=pltpu.CompilerParams(
            dimension_semantics=("parallel",)),
    )(x, w_i_fused, b_proj)

    # ---- Stage 2: recurrence, streamed over T in sublane-aligned chunks ----
    TT = T if T <= 8 else 8            # chunk == T, or a multiple of 8 (sublane tiling)
    n_chunks = pl.cdiv(T, TT)
    kernel = functools.partial(_recurrent_kernel, seq_len=T, chunk=TT)

    out = pl.pallas_call(
        kernel,
        out_shape=jax.ShapeDtypeStruct((B, O), jnp.float32),
        grid=(n_chunks,),
        in_specs=[
            pl.BlockSpec((B, TT, G), lambda c: (0, c, 0)),
            pl.BlockSpec((H, G), lambda c: (0, 0)),
            pl.BlockSpec((1, H), lambda c: (0, 0)),
            pl.BlockSpec((H, O), lambda c: (0, 0)),
            pl.BlockSpec((1, O), lambda c: (0, 0)),
        ],
        out_specs=pl.BlockSpec((B, O), lambda c: (0, 0)),
        scratch_shapes=[pltpu.VMEM((B, H), jnp.float32)],
        compiler_params=pltpu.CompilerParams(
            dimension_semantics=("arbitrary",)),
    )(gates, w_h_fused, b_hn, fc_wt, fc_b2)
    return out


def init_params(key, input_dim, hidden_dim, output_dim):
    """Deterministic init with PyTorch GRU/Linear layouts and gate order [r, z, n]."""
    H = hidden_dim
    k = 1.0 / jnp.sqrt(jnp.float32(H))
    names_shapes = [
        ("weight_ih_l0", (3 * H, input_dim)),
        ("weight_hh_l0", (3 * H, H)),
        ("bias_ih_l0", (3 * H,)),
        ("bias_hh_l0", (3 * H,)),
        ("fc_weight", (output_dim, H)),
        ("fc_bias", (output_dim,)),
    ]
    keys = jax.random.split(key, len(names_shapes))
    return {n: jax.random.uniform(kk, s, jnp.float32, -k, k)
            for (n, s), kk in zip(names_shapes, keys)}


def reference_forward(x, p):
    """Pure-JAX reference of the same GRU + Linear (PyTorch semantics)."""
    H = p["weight_hh_l0"].shape[1]
    w_ih, w_hh = p["weight_ih_l0"], p["weight_hh_l0"]
    b_ih, b_hh = p["bias_ih_l0"], p["bias_hh_l0"]

    def step(h, x_t):
        gi = x_t @ w_ih.T + b_ih       # (B, 3H)
        gh = h @ w_hh.T + b_hh         # (B, 3H)
        r = jax.nn.sigmoid(gi[:, :H] + gh[:, :H])
        z = jax.nn.sigmoid(gi[:, H:2 * H] + gh[:, H:2 * H])
        n = jnp.tanh(gi[:, 2 * H:] + r * gh[:, 2 * H:])
        h = (1.0 - z) * n + z * h
        return h, None

    B = x.shape[0]
    h0 = jnp.zeros((B, H), jnp.float32)
    h_last, _ = lax.scan(step, h0, jnp.transpose(x, (1, 0, 2)))
    return h_last @ p["fc_weight"].T + p["fc_bias"]


if __name__ == "__main__":
    B, T, D, H, O = 2, 8, 16, 32, 4
    key = jax.random.PRNGKey(0)
    kx, kp = jax.random.split(key)
    x = jax.random.normal(kx, (B, T, D), jnp.float32)
    params = init_params(kp, D, H, O)

    out = jax.block_until_ready(rpsr_dqn_forward(x, params))
    ref = reference_forward(x, params)

    assert out.shape == (B, O)
    assert jnp.allclose(out, ref, atol=1e-4, rtol=1e-4)
    print("KERNEL_OK")
</pallas_src>

<mosaic_0001>
module attributes {stable_mosaic.version = 11 : i64} {
  func.func @_proj_kernel(%arg0: i32, %arg1: memref<1x8x16xf32, #tpu.memory_space<vmem>>, %arg2: memref<16x96xf32, #tpu.memory_space<vmem>>, %arg3: memref<1x96xf32, #tpu.memory_space<vmem>>, %arg4: memref<1x8x96xf32, #tpu.memory_space<vmem>>) attributes {dimension_semantics = [#tpu.dimension_semantics<parallel>], iteration_bounds = array<i64: 2>, scalar_prefetch = 0 : i64, scratch_operands = 0 : i64, tpu.core_type = #tpu.core_type<tc>, window_params = [{transform_indices = @transform_0, window_bounds = array<i64: 1, 8, 16>}, {pipeline_mode = #tpu.pipeline_mode<synchronous>, transform_indices = @transform_1, window_bounds = array<i64: 16, 96>}, {pipeline_mode = #tpu.pipeline_mode<synchronous>, transform_indices = @transform_2, window_bounds = array<i64: 1, 96>}, {transform_indices = @transform_3, window_bounds = array<i64: 1, 8, 96>}]} {
    %c0 = arith.constant 0 : index
    %c0_0 = arith.constant 0 : index
    %c0_1 = arith.constant 0 : index
    %0 = vector.load %arg1[%c0, %c0_0, %c0_1] : memref<1x8x16xf32, #tpu.memory_space<vmem>>, vector<1x8x16xf32>
    %1 = vector.shape_cast %0 : vector<1x8x16xf32> to vector<8x16xf32>
    %c0_2 = arith.constant 0 : index
    %c0_3 = arith.constant 0 : index
    %2 = vector.load %arg2[%c0_2, %c0_3] : memref<16x96xf32, #tpu.memory_space<vmem>>, vector<16x96xf32>
    %cst = arith.constant dense<0.000000e+00> : vector<8x96xf32>
    %3 = tpu.matmul %1, %2, %cst {dimension_numbers = #tpu.dot_dimension_numbers<[1], [0], [0], [1], [0, 0, 1, 1], [], []>} : vector<8x16xf32>, vector<16x96xf32>, vector<8x96xf32> -> vector<8x96xf32>
    %c0_4 = arith.constant 0 : index
    %c0_5 = arith.constant 0 : index
    %4 = vector.load %arg3[%c0_4, %c0_5] : memref<1x96xf32, #tpu.memory_space<vmem>>, vector<1x96xf32>
    %5 = vector.broadcast %4 : vector<1x96xf32> to vector<8x96xf32>
    %6 = arith.addf %3, %5 : vector<8x96xf32>
    %c0_6 = arith.constant 0 : index
    %c0_7 = arith.constant 0 : index
    %c0_8 = arith.constant 0 : index
    %7 = vector.load %arg4[%c0_6, %c0_7, %c0_8] : memref<1x8x96xf32, #tpu.memory_space<vmem>>, vector<1x8x96xf32>
    %8 = vector.shape_cast %7 : vector<1x8x96xf32> to vector<8x96xf32>
    %9 = vector.shape_cast %6 : vector<8x96xf32> to vector<1x8x96xf32>
    tpu.vector_store %arg4[%c0_6, %c0_7, %c0_8], %9 {strides = array<i32>} : memref<1x8x96xf32, #tpu.memory_space<vmem>>, vector<1x8x96xf32>,
    return
  }
  func.func @transform_0(%arg0: i32) -> (i32, i32, i32) {
    %c0_i32 = arith.constant 0 : i32
    %c0_i32_0 = arith.constant 0 : i32
    %c0_i32_1 = arith.constant 0 : i32
    return %arg0, %c0_i32, %c0_i32_0 : i32, i32, i32
  }
  func.func @transform_1(%arg0: i32) -> (i32, i32) {
    %c0_i32 = arith.constant 0 : i32
    %c0_i32_0 = arith.constant 0 : i32
    %c0_i32_1 = arith.constant 0 : i32
    return %c0_i32, %c0_i32_0 : i32, i32
  }
  func.func @transform_2(%arg0: i32) -> (i32, i32) {
    %c0_i32 = arith.constant 0 : i32
    %c0_i32_0 = arith.constant 0 : i32
    %c0_i32_1 = arith.constant 0 : i32
    return %c0_i32, %c0_i32_0 : i32, i32
  }
  func.func @transform_3(%arg0: i32) -> (i32, i32, i32) {
    %c0_i32 = arith.constant 0 : i32
    %c0_i32_0 = arith.constant 0 : i32
    %c0_i32_1 = arith.constant 0 : i32
    return %arg0, %c0_i32, %c0_i32_0 : i32, i32, i32
  }
}

</mosaic_0001>

<llo_original>
// kernel: tpu_custom_call.1
$region0: #{tpu_custom_call.1}
  #allocation0 [shape = 'u32[]', space=smem, size = 0x4, offset = 0x4, fixed_abs, tag = 'smem constant byte address 0x4 - core index']
  #allocation1 [shape = 'u32[72,128]{1,0:T(1,128)}', space=vmem, size = 0x9000, scoped, tag = 'internal scratch']
  %s0 = inlined_call_operand.hbm [shape: f32[2,8,16], index: 0, kind: input, shape index: {}]
  %s1 = inlined_call_operand.hbm [shape: f32[16,96], index: 1, kind: input, shape index: {}]
  %s2 = inlined_call_operand.vmem [shape: f32[1,96], index: 2, kind: input, shape index: {}]
  %s3 = inlined_call_operand.hbm [shape: f32[2,8,96], index: 3, kind: output, shape index: {}]
  %s4 = sld [smem:[#allocation0]]
  $region53: #{tpu_custom_call.1} parent=0
    _
  %s6 = ssub.s32 1, %s4
  %s7 = scalar_select 0, %s6, %s4
  $region1: #{tpu_custom_call.1} parent=0
    #allocation2 [shape = 'u8[8192]{0}', space=vmem, size = 0x2000, scoped, tag = 'input window, operand 0']
    #allocation3 [shape = 's32[2]{0}', space=sflag, size = 0x8, scoped, tag = 'scoped memory for tpu_custom_call.1']
    #allocation4 [shape = 's32[2]{0}', space=sflag, size = 0x8, scoped, tag = 'scoped memory for tpu_custom_call.1']
    #allocation5 [shape = 'u8[8192]{0}', space=vmem, size = 0x2000, scoped, tag = 'input window, operand 1, single buffered']
    #allocation6 [shape = 's32[1]{0}', space=sflag, size = 0x4, scoped, tag = 'scoped memory for tpu_custom_call.1']
    #allocation7 [shape = 'u8[8192]{0}', space=vmem, size = 0x2000, scoped, tag = 'output window, operand 0']
    %8 = vsyncpa [#allocation3], 0
    %s9 = scalar_lea.sflag [#allocation3], 1
    %10 = vsyncpa %s9, 0
    %11 = vsyncpa [#allocation6], 0
    %12 = vsyncpa [#allocation4], 0
    %s13 = scalar_lea.sflag [#allocation4], 1
    %14 = vsyncpa %s13, 0
    loop: start=0, step=1, limit=4
    $region2: #{tpu_custom_call.1} parent=1 // loop_pre_header
      _
    $region3: #{tpu_custom_call.1} parent=1 // loop_header
      %s16 = sphi 0, %s20
      %p17 = scmp.ge.s32.totalorder %s16, 4
      %s26 = sphi 0, %s28
      %s29 = sphi 0, %s26
      %s30 = sphi 0, %s29
      %s46 = sphi 0, %s30
      %s50 = sphi 0, %s50
      %s52 = sphi 0, %s50
      %s53 = sphi 0, %s52
      %s67 = sphi 0, %s53
      %s71 = sphi 0, %s71
      %s73 = sphi 0, %s71
      %s74 = sphi 0, %s73
      %s88 = sphi 0, %s74
      %s94 = sphi 0, %s96
      %s97 = sphi 0, %s94
      %s98 = sphi 0, %s97
      %s114 = sphi 0, %s98
    $region4: #{tpu_custom_call.1} parent=1 // loop_header_branch
      %19 = sbr.rel (%p17) target = $region8
    $region5: #{tpu_custom_call.1} parent=1 // loop_body
      %s21 = ssub.s32 %s16, 1
      %s22 = ssub.s32 %s16, 2
      %s23 = sadd.s32 %s16, 1
      %s24 = ssub.s32 %s16, %s23
      %p25 = scmp.eq.s32.totalorder %s24, 0
      %s27 = sadd.s32 %s26, 1
      %s28 = scalar_select %p25, %s26, %s27
      %p31 = pneg %p25
      %p32 = scmp.eq.s32.totalorder %s16, 1
      %p33 = por %p31, %p32
      %p34 = scmp.ne.s32.totalorder %s26, %s29
      %p35 = scmp.eq.s32.totalorder %s16, 0
      %p36 = por %p34, %p35
      %p37 = scmp.ne.s32.totalorder %s26, %s29
      %p38 = scmp.eq.s32.totalorder %s21, 1
      %p39 = por %p37, %p38
      %p40 = scmp.ne.s32.totalorder %s29, %s30
      %p41 = scmp.eq.s32.totalorder %s21, 0
      %p42 = por %p40, %p41
      %p43 = scmp.ne.s32.totalorder %s29, %s30
      %p44 = scmp.eq.s32.totalorder %s22, 1
      %p45 = por %p43, %p44
      %p47 = scmp.ne.s32.totalorder %s30, %s46
      %p48 = scmp.eq.s32.totalorder %s22, 0
      %p49 = por %p47, %p48
      %s51 = sadd.s32 %s50, 1
      %p54 = scmp.eq.s32.totalorder %s16, 1
      %p55 = scmp.ne.s32.totalorder %s50, %s52
      %p56 = scmp.eq.s32.totalorder %s16, 0
      %p57 = por %p55, %p56
      %p58 = scmp.ne.s32.totalorder %s50, %s52
      %p59 = scmp.eq.s32.totalorder %s21, 1
      %p60 = por %p58, %p59
      %p61 = scmp.ne.s32.totalorder %s52, %s53
      %p62 = scmp.eq.s32.totalorder %s21, 0
      %p63 = por %p61, %p62
      %p64 = scmp.ne.s32.totalorder %s52, %s53
      %p65 = scmp.eq.s32.totalorder %s22, 1
      %p66 = por %p64, %p65
      %p68 = scmp.ne.s32.totalorder %s53, %s67
      %p69 = scmp.eq.s32.totalorder %s22, 0
      %p70 = por %p68, %p69
      %s72 = sadd.s32 %s71, 1
      %p75 = scmp.eq.s32.totalorder %s16, 1
      %p76 = scmp.ne.s32.totalorder %s71, %s73
      %p77 = scmp.eq.s32.totalorder %s16, 0
      %p78 = por %p76, %p77
      %p79 = scmp.ne.s32.totalorder %s71, %s73
      %p80 = scmp.eq.s32.totalorder %s21, 1
      %p81 = por %p79, %p80
      %p82 = scmp.ne.s32.totalorder %s73, %s74
      %p83 = scmp.eq.s32.totalorder %s21, 0
      %p84 = por %p82, %p83
      %p85 = scmp.ne.s32.totalorder %s73, %s74
      %p86 = scmp.eq.s32.totalorder %s22, 1
      %p87 = por %p85, %p86
      %p89 = scmp.ne.s32.totalorder %s74, %s88
      %p90 = scmp.eq.s32.totalorder %s22, 0
      %p91 = por %p89, %p90
      %s92 = ssub.s32 %s16, %s23
      %p93 = scmp.eq.s32.totalorder %s92, 0
      %s95 = sadd.s32 %s94, 1
      %s96 = scalar_select %p93, %s94, %s95
      %p99 = pneg %p93
      %p100 = scmp.eq.s32.totalorder %s16, 1
      %p101 = por %p99, %p100
      %p102 = scmp.ne.s32.totalorder %s94, %s97
      %p103 = scmp.eq.s32.totalorder %s16, 0
      %p104 = por %p102, %p103
      %p105 = scmp.ne.s32.totalorder %s94, %s97
      %p106 = scmp.eq.s32.totalorder %s21, 1
      %p107 = por %p105, %p106
      %p108 = scmp.ne.s32.totalorder %s97, %s98
      %p109 = scmp.eq.s32.totalorder %s21, 0
      %p110 = por %p108, %p109
      %p111 = scmp.ne.s32.totalorder %s97, %s98
      %p112 = scmp.eq.s32.totalorder %s22, 1
      %p113 = por %p111, %p112
      %p115 = scmp.ne.s32.totalorder %s98, %s114
      %p116 = scmp.eq.s32.totalorder %s22, 0
      %p117 = por %p115, %p116
      %p118 = scmp.le.s32.totalorder 1, %s16
      %p119 = scmp.lt.s32.totalorder %s16, 3
      %p120 = pnand %p118, %p119
      %p121 = pneg %p120
      // Predicated region
      $region9: #{tpu_custom_call.1} parent=5 // pred_check
        _
      $region10: #{tpu_custom_call.1} parent=5 // pred_check_branch
        %123 = sbr.rel (%p120) target = $region12
      $region11: #{tpu_custom_call.1} parent=5 // pred_region
        %s124 = ssub.s32 %s16, 1
        // Predicated region
        $region13: #{tpu_custom_call.1} parent=11 // pred_check
          %p125 = pneg %p63
        $region14: #{tpu_custom_call.1} parent=11 // pred_check_branch
          %127 = sbr.rel (%p125) target = $region16
        $region15: #{tpu_custom_call.1} parent=11 // pred_region
          %129 = vsyncadd [#allocation6], 0
          %s130 = sshll.u32 %s1, 4
          %s131 = int_to_ptr.hbm [resolvable:$true] %s130
          %s132 = sshll.u32 [#allocation5], 4
          %s133 = int_to_ptr.vmem [resolvable:$true] %s132
          %138 = dma.hbm_to_vmem [thread:$0]  %s131, 256, %s133, [#allocation6], 128, 128, 8
        $region16: #{tpu_custom_call.1} parent=11 // pred_fallthru
          _
        // Predicated region
        $region17: #{tpu_custom_call.1} parent=11 // pred_check
          %p139 = pneg %p84
        $region18: #{tpu_custom_call.1} parent=11 // pred_check_branch
          %141 = sbr.rel (%p139) target = $region20
        $region19: #{tpu_custom_call.1} parent=11 // pred_region
          _
        $region20: #{tpu_custom_call.1} parent=11 // pred_fallthru
          _
      $region12: #{tpu_custom_call.1} parent=5 // pred_fallthru
        _
      %p142 = scmp.lt.s32.totalorder %s16, 2
      // Predicated region
      $region21: #{tpu_custom_call.1} parent=5 // pred_check
        %p143 = pneg %p142
      $region22: #{tpu_custom_call.1} parent=5 // pred_check_branch
        %145 = sbr.rel (%p143) target = $region24
      $region23: #{tpu_custom_call.1} parent=5 // pred_region
        // Predicated region
        $region25: #{tpu_custom_call.1} parent=23 // pred_check
          %p146 = pneg %p36
        $region26: #{tpu_custom_call.1} parent=23 // pred_check_branch
          %148 = sbr.rel (%p146) target = $region28
        $region27: #{tpu_custom_call.1} parent=23 // pred_region
          %s149 = sand.u32 %s26, 1
          %s150 = scalar_lea.sflag [#allocation3], %s149
          %s151 = sand.u32 %s26, 1
          %s152 = smul.addr %s151, 8
          %s153 = scalar_lea.vmem [#allocation2], %s152
          %155 = vsyncadd %s150, 0
          %s156 = smul.addr %s16, 8
          %s157 = scalar_lea.hbm %s0, %s156
          %s159 = sshll.u32 %s157, 4
          %s160 = int_to_ptr.hbm [resolvable:$true] %s159
          %s161 = sshll.u32 %s153, 4
          %s162 = int_to_ptr.vmem [resolvable:$true] %s161
          %164 = dma.hbm_to_vmem [thread:$0]  %s160, 128, %s162, %s150
        $region28: #{tpu_custom_call.1} parent=23 // pred_fallthru
          _
      $region24: #{tpu_custom_call.1} parent=5 // pred_fallthru
        _
      %p165 = scmp.le.s32.totalorder 1, %s16
      %p166 = scmp.lt.s32.totalorder %s16, 3
      %p167 = pnand %p165, %p166
      %p168 = pneg %p167
      // Predicated region
      $region29: #{tpu_custom_call.1} parent=5 // pred_check
        _
      $region30: #{tpu_custom_call.1} parent=5 // pred_check_branch
        %170 = sbr.rel (%p167) target = $region32
      $region31: #{tpu_custom_call.1} parent=5 // pred_region
        %s171 = ssub.s32 %s16, 1
        %s172 = sand.u32 %s29, 1
        %s173 = scalar_lea.sflag [#allocation3], %s172
        %s174 = sand.u32 %s29, 1
        %s175 = smul.addr %s174, 8
        %s176 = scalar_lea.vmem [#allocation2], %s175
        // Predicated region
        $region33: #{tpu_custom_call.1} parent=31 // pred_check
          %p177 = pneg %p42
        $region34: #{tpu_custom_call.1} parent=31 // pred_check_branch
          %179 = sbr.rel (%p177) target = $region36
        $region35: #{tpu_custom_call.1} parent=31 // pred_region
          %181 = dma.done %s173, 128
        $region36: #{tpu_custom_call.1} parent=31 // pred_fallthru
          _
        // Predicated region
        $region37: #{tpu_custom_call.1} parent=31 // pred_check
          %p182 = pneg %p63
        $region38: #{tpu_custom_call.1} parent=31 // pred_check_branch
          %184 = sbr.rel (%p182) target = $region40
        $region39: #{tpu_custom_call.1} parent=31 // pred_region
          %186 = dma.done [#allocation6], 256
        $region40: #{tpu_custom_call.1} parent=31 // pred_fallthru
          _
        %s187 = sand.u32 %s29, 1
        %s188 = scalar_lea.sflag [#allocation3], %s187
        %s189 = sand.u32 %s29, 1
        %s190 = smul.addr %s189, 8
        %s191 = scalar_lea.vmem [#allocation2], %s190
        %p192 = pneg %p42
        %p193 = pneg %p39
        %p194 = pneg %p63
        %p195 = pneg %p60
        %p196 = pneg %p84
        %p197 = pneg %p81
        %p198 = pneg %p110
        %p199 = pneg %p107
        %s200 = sand.u32 %s97, 1
        %s201 = scalar_lea.sflag [#allocation4], %s200
        %s202 = sand.u32 %s97, 1
        %s203 = smul.addr %s202, 8
        %s204 = scalar_lea.vmem [#allocation7], %s203
        %v205 = vld [vmem:[%s176] sm:$0xff]
        %v206 = vld [vmem:[#allocation5] sm:$0xff]
        %v207 = vld [vmem:[#allocation5 + $0x8] sm:$0xff]
        %v208 = vld [vmem:[%s2] sm:$0x1]
        %v210 = vperm.slane %v208, 0
        %vm212 = vcmask 130048
        %v214 = vsel %vm212, %v205, 0
        %216 = vmatpush.msra.mxu0 0.0
        %217 = vmatpush.msra.mxu0 0.0
        %218 = vmatpush.msra.mxu0 0.0
        %219 = vmatpush.msra.mxu0 0.0
        %220 = vmatpush.msra.mxu0 0.0
        %221 = vmatpush.msra.mxu0 0.0
        %222 = vmatpush.msra.mxu0 0.0
        %223 = vmatpush.msra.mxu0 0.0
        %224 = vmatpush.msra.mxu0 0.0
        %225 = vmatpush.msra.mxu0 0.0
        %226 = vmatpush.msra.mxu0 0.0
        %227 = vmatpush.msra.mxu0 0.0
        %228 = vmatpush.msra.mxu0 0.0
        %229 = vmatpush.msra.mxu0 0.0
        %230 = vmatpush.msra.mxu0 %v207
        %231 = vmatpush.msra.mxu0 %v206
        %232 = vmatmul.f32.gmra.mxu0 %v214
        %v233 = vpop.f32.mrf.mxu0
        %v234 = vadd.f32 %v210, %v233
        %235 = vdwg.mxu0
        %vm236 = vcmask 785408
        %237 = vst.msk [vmem:[%s204] sm:$0xff] %vm236, %v234
        %s238 = sand.u32 %s97, 1
        %s239 = scalar_lea.sflag [#allocation4], %s238
        %s240 = sand.u32 %s97, 1
        %s241 = smul.addr %s240, 8
        %s242 = scalar_lea.vmem [#allocation7], %s241
        // Predicated region
        $region41: #{tpu_custom_call.1} parent=31 // pred_check
          %p243 = pneg %p107
        $region42: #{tpu_custom_call.1} parent=31 // pred_check_branch
          %245 = sbr.rel (%p243) target = $region44
        $region43: #{tpu_custom_call.1} parent=31 // pred_region
          %247 = vsyncadd %s239, 0
          %s248 = smul.addr %s21, 8
          %s249 = scalar_lea.hbm %s3, %s248
          %s251 = sshll.u32 %s242, 4
          %s252 = int_to_ptr.vmem [resolvable:$true] %s251
          %s253 = sshll.u32 %s249, 4
          %s254 = int_to_ptr.hbm [resolvable:$true] %s253
          %256 = dma.vmem_to_hbm [thread:$0]  %s252, 128, %s254, %s239
        $region44: #{tpu_custom_call.1} parent=31 // pred_fallthru
          _
      $region32: #{tpu_custom_call.1} parent=5 // pred_fallthru
        _
      %p257 = scmp.le.s32.totalorder 2, %s16
      // Predicated region
      $region45: #{tpu_custom_call.1} parent=5 // pred_check
        %p258 = pneg %p257
      $region46: #{tpu_custom_call.1} parent=5 // pred_check_branch
        %260 = sbr.rel (%p258) target = $region48
      $region47: #{tpu_custom_call.1} parent=5 // pred_region
        %s261 = ssub.s32 %s16, 2
        // Predicated region
        $region49: #{tpu_custom_call.1} parent=47 // pred_check
          %p262 = pneg %p113
        $region50: #{tpu_custom_call.1} parent=47 // pred_check_branch
          %264 = sbr.rel (%p262) target = $region52
        $region51: #{tpu_custom_call.1} parent=47 // pred_region
          %s265 = sand.u32 %s98, 1
          %s266 = scalar_lea.sflag [#allocation4], %s265
          %s267 = sand.u32 %s98, 1
          %s268 = smul.addr %s267, 8
          %s269 = scalar_lea.vmem [#allocation7], %s268
          %271 = dma.done %s266, 128
        $region52: #{tpu_custom_call.1} parent=47 // pred_fallthru
          _
      $region48: #{tpu_custom_call.1} parent=5 // pred_fallthru
        _
    $region6: #{tpu_custom_call.1} parent=1 // loop_footer
      %s20 = sadd.s32 1, %s16
    $region7: #{tpu_custom_call.1} parent=1 // loop_footer_branch
      %15 = sbr.rel target = $region3
    $region8: #{tpu_custom_call.1} parent=1 // loop_exit
      _
    %272 = vsyncpa [#allocation3], 1
    %s273 = scalar_lea.sflag [#allocation3], 1
    %274 = vsyncpa %s273, 1
    %275 = vsyncpa [#allocation6], 1
    %276 = vsyncpa [#allocation4], 1
    %s277 = scalar_lea.sflag [#allocation4], 1
    %278 = vsyncpa %s277, 1

</llo_original>
